<compile_context>
chip_gen: v7x
topology: tpu7x:2x2x1
jax: 0.10.0
libtpu: 0.0.40
codegen_flags: <defaults>
</compile_context>

<pallas_src>
import jax
import jax.numpy as jnp
import numpy as np
from jax.experimental import pallas as pl
from jax.experimental.pallas import tpu as pltpu


def _matmul_transform_kernel(x_ref, alpha_ref, o_ref):
    # x_ref: (Bt, L, D) native dtype; alpha_ref: (L, 1) in x.dtype; o_ref like x.
    x = x_ref[...]
    _, L, D = x.shape
    inv_ld = 1.0 / (L * D)                        # compile-time constants
    inv_ll = 1.0 / (L * L)

    # f32-accumulated reductions (only the reduction path is upcast).
    # s[b, d] = sum_l x[b, l, d]                               (sublane reduce)
    s = jnp.sum(x, axis=1, keepdims=True, dtype=jnp.float32)   # (Bt, 1, D)
    # y1[b, l] = sum_d x[b, l, d] * s[b, d] / (L * D)          (lane reduce)
    y1 = jnp.sum(x.astype(jnp.float32) * s, axis=-1, keepdims=True) * inv_ld
    # y2 = y1 * sum_l(y1) / L^2   == mean(y1 @ y1^T, -1) / L   (exact)
    y2 = y1 * (jnp.sum(y1, axis=1, keepdims=True) * inv_ll)    # (Bt, L, 1)

    # Final combine stays in the native dtype (packed bf16 on v6e/v7x):
    # out = x * y2 + alpha   (broadcast over Bt and D)
    o_ref[...] = x * y2.astype(x.dtype) + alpha_ref[...][None]


def _vmem_config():
    """Returns (block budget for tiling, vmem_limit_bytes), generation-aware."""
    cap = 64 << 20                                 # conservative default (v7x)
    try:
        cap = getattr(pltpu.get_tpu_info(), "vmem_capacity_bytes", cap)
    except Exception:
        pass
    if cap >= (96 << 20):                          # v5e / v6e: 128 MiB physical
        return 48 << 20, 64 << 20
    return 20 << 20, 32 << 20                      # v7x: 64 MiB physical


def _pick_batch_tile(B, L, D, itemsize, vmem_budget_bytes):
    """Largest divisor of B whose full footprint fits the VMEM budget.

    Footprint per batch row = double-buffered input + output blocks
    (2 * 2 * L*D*itemsize) plus ~3 full-size f32 in-kernel temporaries.
    Preference order: even grid extent (both v7x TensorCores busy),
    then grid >= 2, then the largest fitting divisor.
    """
    per_batch = 4 * L * D * itemsize + 3 * L * D * 4
    max_bt = max(1, vmem_budget_bytes // per_batch)
    max_bt = min(max_bt, B)
    divisors = [bt for bt in range(1, max_bt + 1) if B % bt == 0]
    if not divisors:
        # TODO(synk): if even bt=1 overflows (huge L*D), fall back to a
        # two-pass grid over L (pass 1: accumulate s & y1, pass 2: stream out).
        return 1
    even = [bt for bt in divisors if (B // bt) % 2 == 0]
    if even:
        return max(even)
    ge2 = [bt for bt in divisors if (B // bt) >= 2]
    if ge2:
        return max(ge2)
    return max(divisors)


def matmul_transform(x: jax.Array, alpha: jax.Array) -> jax.Array:
    """x: (B, L, D), alpha: (L, 1) -> (B, L, D)."""
    B, L, D = x.shape
    alpha = alpha.astype(x.dtype)                  # keep the add in native dtype
    itemsize = jnp.dtype(x.dtype).itemsize
    budget, vmem_limit = _vmem_config()
    bt = _pick_batch_tile(B, L, D, itemsize, budget)
    grid = (B // bt,)

    # TODO(synk): if some deployment shape has D % 128 != 0, a lane-dense
    # reshape of the output slab would avoid masked vst.msk partial stores;
    # for production shapes (D % 128 == 0) the (bt, L, D) blocks are lane-dense.

    # Mem-bound op: ~5 flops/element, read x + write out.
    cost = pl.CostEstimate(
        flops=5 * B * L * D,
        transcendentals=0,
        bytes_accessed=2 * B * L * D * itemsize + L * itemsize,
    )

    return pl.pallas_call(
        _matmul_transform_kernel,
        out_shape=jax.ShapeDtypeStruct((B, L, D), x.dtype),
        grid_spec=pltpu.PrefetchScalarGridSpec(
            num_scalar_prefetch=0,
            grid=grid,
            in_specs=[
                pl.BlockSpec((bt, L, D), lambda b: (b, 0, 0)),
                pl.BlockSpec((L, 1), lambda b: (0, 0)),
            ],
            out_specs=pl.BlockSpec((bt, L, D), lambda b: (b, 0, 0)),
        ),
        compiler_params=pltpu.CompilerParams(
            dimension_semantics=("parallel",),
            vmem_limit_bytes=vmem_limit,
        ),
        cost_estimate=cost,
    )(x, alpha)


def _reference(x, alpha):
    D = x.shape[-1]
    L = x.shape[1]
    y = jnp.mean(x @ jnp.swapaxes(x, 2, 1), axis=-1, keepdims=True) / D
    y = jnp.mean(y @ jnp.swapaxes(y, 2, 1), axis=-1, keepdims=True) / L
    y = y * x
    return alpha + y


if __name__ == "__main__":
    B, L, D = 2, 8, 32
    key = jax.random.PRNGKey(0)
    x = jax.random.normal(key, (B, L, D), dtype=jnp.float32)
    # Deterministic parameter init: torch.ones(l_dim, 1)
    alpha = jnp.ones((L, 1), dtype=jnp.float32)

    out = jax.block_until_ready(matmul_transform(x, alpha))

    ref = _reference(x, alpha)
    assert out.shape == (B, L, D)
    np.testing.assert_allclose(np.asarray(out), np.asarray(ref), rtol=1e-5, atol=1e-5)

    print("KERNEL_OK")
</pallas_src>

<mosaic_0001>
module attributes {stable_mosaic.version = 11 : i64} {
  func.func @_matmul_transform_kernel(%arg0: i32, %arg1: memref<1x8x32xf32, #tpu.memory_space<vmem>>, %arg2: memref<8x1xf32, #tpu.memory_space<vmem>>, %arg3: memref<1x8x32xf32, #tpu.memory_space<vmem>>) attributes {dimension_semantics = [#tpu.dimension_semantics<parallel>], iteration_bounds = array<i64: 2>, scalar_prefetch = 0 : i64, scratch_operands = 0 : i64, tpu.core_type = #tpu.core_type<tc>, window_params = [{transform_indices = @transform_0, window_bounds = array<i64: 1, 8, 32>}, {pipeline_mode = #tpu.pipeline_mode<synchronous>, transform_indices = @transform_1, window_bounds = array<i64: 8, 1>}, {transform_indices = @transform_2, window_bounds = array<i64: 1, 8, 32>}]} {
    %c0 = arith.constant 0 : index
    %c0_0 = arith.constant 0 : index
    %c0_1 = arith.constant 0 : index
    %0 = vector.load %arg1[%c0, %c0_0, %c0_1] : memref<1x8x32xf32, #tpu.memory_space<vmem>>, vector<1x8x32xf32>
    %cst = arith.constant dense<0.000000e+00> : vector<1x32xf32>
    %1 = vector.multi_reduction <add>, %0, %cst [1] : vector<1x8x32xf32> to vector<1x32xf32>
    %2 = vector.shape_cast %1 : vector<1x32xf32> to vector<1x1x32xf32>
    %3 = vector.broadcast %2 : vector<1x1x32xf32> to vector<1x8x32xf32>
    %4 = arith.mulf %0, %3 : vector<1x8x32xf32>
    %cst_2 = arith.constant dense<0.000000e+00> : vector<1x8xf32>
    %5 = vector.multi_reduction <add>, %4, %cst_2 [2] : vector<1x8x32xf32> to vector<1x8xf32>
    %6 = vector.shape_cast %5 : vector<1x8xf32> to vector<1x8x1xf32>
    %cst_3 = arith.constant 3.906250e-03 : f32
    %7 = vector.broadcast %cst_3 : f32 to vector<1x8x1xf32>
    %8 = arith.mulf %6, %7 : vector<1x8x1xf32>
    %cst_4 = arith.constant dense<0.000000e+00> : vector<1x1xf32>
    %9 = vector.multi_reduction <add>, %8, %cst_4 [1] : vector<1x8x1xf32> to vector<1x1xf32>
    %10 = vector.shape_cast %9 : vector<1x1xf32> to vector<1x1x1xf32>
    %cst_5 = arith.constant 1.562500e-02 : f32
    %11 = vector.broadcast %cst_5 : f32 to vector<1x1x1xf32>
    %12 = arith.mulf %10, %11 : vector<1x1x1xf32>
    %13 = vector.broadcast %12 : vector<1x1x1xf32> to vector<1x8x1xf32>
    %14 = arith.mulf %8, %13 : vector<1x8x1xf32>
    %15 = vector.broadcast %14 : vector<1x8x1xf32> to vector<1x8x32xf32>
    %16 = arith.mulf %0, %15 : vector<1x8x32xf32>
    %c0_6 = arith.constant 0 : index
    %c0_7 = arith.constant 0 : index
    %17 = vector.load %arg2[%c0_6, %c0_7] : memref<8x1xf32, #tpu.memory_space<vmem>>, vector<8x1xf32>
    %18 = vector.shape_cast %17 : vector<8x1xf32> to vector<1x8x1xf32>
    %19 = vector.broadcast %18 : vector<1x8x1xf32> to vector<1x8x32xf32>
    %20 = arith.addf %16, %19 : vector<1x8x32xf32>
    %c0_8 = arith.constant 0 : index
    %c0_9 = arith.constant 0 : index
    %c0_10 = arith.constant 0 : index
    %21 = vector.load %arg3[%c0_8, %c0_9, %c0_10] : memref<1x8x32xf32, #tpu.memory_space<vmem>>, vector<1x8x32xf32>
    tpu.vector_store %arg3[%c0_8, %c0_9, %c0_10], %20 {strides = array<i32>} : memref<1x8x32xf32, #tpu.memory_space<vmem>>, vector<1x8x32xf32>,
    return
  }
  func.func @transform_0(%arg0: i32) -> (i32, i32, i32) {
    %c0_i32 = arith.constant 0 : i32
    %c0_i32_0 = arith.constant 0 : i32
    %c0_i32_1 = arith.constant 0 : i32
    return %arg0, %c0_i32, %c0_i32_0 : i32, i32, i32
  }
  func.func @transform_1(%arg0: i32) -> (i32, i32) {
    %c0_i32 = arith.constant 0 : i32
    %c0_i32_0 = arith.constant 0 : i32
    %c0_i32_1 = arith.constant 0 : i32
    return %c0_i32, %c0_i32_0 : i32, i32
  }
  func.func @transform_2(%arg0: i32) -> (i32, i32, i32) {
    %c0_i32 = arith.constant 0 : i32
    %c0_i32_0 = arith.constant 0 : i32
    %c0_i32_1 = arith.constant 0 : i32
    return %arg0, %c0_i32, %c0_i32_0 : i32, i32, i32
  }
}

</mosaic_0001>

<llo_original>
// kernel: tpu_custom_call.1
$region0: #{tpu_custom_call.1}
  #allocation0 [shape = 'u32[]', space=smem, size = 0x4, offset = 0x4, fixed_abs, tag = 'smem constant byte address 0x4 - core index']
  #allocation1 [shape = 'u32[144,128]{1,0:T(1,128)}', space=vmem, size = 0x12000, scoped, tag = 'internal scratch']
  %s0 = inlined_call_operand.hbm [shape: f32[2,8,32], index: 0, kind: input, shape index: {}]
  %s1 = inlined_call_operand.vmem [shape: f32[8,1], index: 1, kind: input, shape index: {}]
  %s2 = inlined_call_operand.hbm [shape: f32[2,8,32], index: 2, kind: output, shape index: {}]
  %s3 = sld [smem:[#allocation0]]
  $region45: #{tpu_custom_call.1} parent=0
    _
  %s5 = ssub.s32 1, %s3
  %s6 = scalar_select 0, %s5, %s3
  $region1: #{tpu_custom_call.1} parent=0
    #allocation2 [shape = 'u8[8192]{0}', space=vmem, size = 0x2000, scoped, tag = 'input window, operand 0']
    #allocation3 [shape = 's32[2]{0}', space=sflag, size = 0x8, scoped, tag = 'scoped memory for tpu_custom_call.1']
    #allocation4 [shape = 's32[2]{0}', space=sflag, size = 0x8, scoped, tag = 'scoped memory for tpu_custom_call.1']
    #allocation5 [shape = 'u8[8192]{0}', space=vmem, size = 0x2000, scoped, tag = 'output window, operand 0']
    %7 = vsyncpa [#allocation3], 0
    %s8 = scalar_lea.sflag [#allocation3], 1
    %9 = vsyncpa %s8, 0
    %10 = vsyncpa [#allocation4], 0
    %s11 = scalar_lea.sflag [#allocation4], 1
    %12 = vsyncpa %s11, 0
    loop: start=0, step=1, limit=4
    $region2: #{tpu_custom_call.1} parent=1 // loop_pre_header
      _
    $region3: #{tpu_custom_call.1} parent=1 // loop_header
      %s14 = sphi 0, %s18
      %p15 = scmp.ge.s32.totalorder %s14, 4
      %s24 = sphi 0, %s26
      %s27 = sphi 0, %s24
      %s28 = sphi 0, %s27
      %s44 = sphi 0, %s28
      %s48 = sphi 0, %s48
      %s50 = sphi 0, %s48
      %s51 = sphi 0, %s50
      %s65 = sphi 0, %s51
      %s71 = sphi 0, %s73
      %s74 = sphi 0, %s71
      %s75 = sphi 0, %s74
      %s91 = sphi 0, %s75
    $region4: #{tpu_custom_call.1} parent=1 // loop_header_branch
      %17 = sbr.rel (%p15) target = $region8
    $region5: #{tpu_custom_call.1} parent=1 // loop_body
      %s19 = ssub.s32 %s14, 1
      %s20 = ssub.s32 %s14, 2
      %s21 = sadd.s32 %s14, 1
      %s22 = ssub.s32 %s14, %s21
      %p23 = scmp.eq.s32.totalorder %s22, 0
      %s25 = sadd.s32 %s24, 1
      %s26 = scalar_select %p23, %s24, %s25
      %p29 = pneg %p23
      %p30 = scmp.eq.s32.totalorder %s14, 1
      %p31 = por %p29, %p30
      %p32 = scmp.ne.s32.totalorder %s24, %s27
      %p33 = scmp.eq.s32.totalorder %s14, 0
      %p34 = por %p32, %p33
      %p35 = scmp.ne.s32.totalorder %s24, %s27
      %p36 = scmp.eq.s32.totalorder %s19, 1
      %p37 = por %p35, %p36
      %p38 = scmp.ne.s32.totalorder %s27, %s28
      %p39 = scmp.eq.s32.totalorder %s19, 0
      %p40 = por %p38, %p39
      %p41 = scmp.ne.s32.totalorder %s27, %s28
      %p42 = scmp.eq.s32.totalorder %s20, 1
      %p43 = por %p41, %p42
      %p45 = scmp.ne.s32.totalorder %s28, %s44
      %p46 = scmp.eq.s32.totalorder %s20, 0
      %p47 = por %p45, %p46
      %s49 = sadd.s32 %s48, 1
      %p52 = scmp.eq.s32.totalorder %s14, 1
      %p53 = scmp.ne.s32.totalorder %s48, %s50
      %p54 = scmp.eq.s32.totalorder %s14, 0
      %p55 = por %p53, %p54
      %p56 = scmp.ne.s32.totalorder %s48, %s50
      %p57 = scmp.eq.s32.totalorder %s19, 1
      %p58 = por %p56, %p57
      %p59 = scmp.ne.s32.totalorder %s50, %s51
      %p60 = scmp.eq.s32.totalorder %s19, 0
      %p61 = por %p59, %p60
      %p62 = scmp.ne.s32.totalorder %s50, %s51
      %p63 = scmp.eq.s32.totalorder %s20, 1
      %p64 = por %p62, %p63
      %p66 = scmp.ne.s32.totalorder %s51, %s65
      %p67 = scmp.eq.s32.totalorder %s20, 0
      %p68 = por %p66, %p67
      %s69 = ssub.s32 %s14, %s21
      %p70 = scmp.eq.s32.totalorder %s69, 0
      %s72 = sadd.s32 %s71, 1
      %s73 = scalar_select %p70, %s71, %s72
      %p76 = pneg %p70
      %p77 = scmp.eq.s32.totalorder %s14, 1
      %p78 = por %p76, %p77
      %p79 = scmp.ne.s32.totalorder %s71, %s74
      %p80 = scmp.eq.s32.totalorder %s14, 0
      %p81 = por %p79, %p80
      %p82 = scmp.ne.s32.totalorder %s71, %s74
      %p83 = scmp.eq.s32.totalorder %s19, 1
      %p84 = por %p82, %p83
      %p85 = scmp.ne.s32.totalorder %s74, %s75
      %p86 = scmp.eq.s32.totalorder %s19, 0
      %p87 = por %p85, %p86
      %p88 = scmp.ne.s32.totalorder %s74, %s75
      %p89 = scmp.eq.s32.totalorder %s20, 1
      %p90 = por %p88, %p89
      %p92 = scmp.ne.s32.totalorder %s75, %s91
      %p93 = scmp.eq.s32.totalorder %s20, 0
      %p94 = por %p92, %p93
      %p95 = scmp.le.s32.totalorder 1, %s14
      %p96 = scmp.lt.s32.totalorder %s14, 3
      %p97 = pnand %p95, %p96
      %p98 = pneg %p97
      // Predicated region
      $region9: #{tpu_custom_call.1} parent=5 // pred_check
        _
      $region10: #{tpu_custom_call.1} parent=5 // pred_check_branch
        %100 = sbr.rel (%p97) target = $region12
      $region11: #{tpu_custom_call.1} parent=5 // pred_region
        %s101 = ssub.s32 %s14, 1
        // Predicated region
        $region13: #{tpu_custom_call.1} parent=11 // pred_check
          %p102 = pneg %p61
        $region14: #{tpu_custom_call.1} parent=11 // pred_check_branch
          %104 = sbr.rel (%p102) target = $region16
        $region15: #{tpu_custom_call.1} parent=11 // pred_region
          _
        $region16: #{tpu_custom_call.1} parent=11 // pred_fallthru
          _
      $region12: #{tpu_custom_call.1} parent=5 // pred_fallthru
        _
      %p105 = scmp.lt.s32.totalorder %s14, 2
      // Predicated region
      $region17: #{tpu_custom_call.1} parent=5 // pred_check
        %p106 = pneg %p105
      $region18: #{tpu_custom_call.1} parent=5 // pred_check_branch
        %108 = sbr.rel (%p106) target = $region20
      $region19: #{tpu_custom_call.1} parent=5 // pred_region
        // Predicated region
        $region21: #{tpu_custom_call.1} parent=19 // pred_check
          %p109 = pneg %p34
        $region22: #{tpu_custom_call.1} parent=19 // pred_check_branch
          %111 = sbr.rel (%p109) target = $region24
        $region23: #{tpu_custom_call.1} parent=19 // pred_region
          %s112 = sand.u32 %s24, 1
          %s113 = scalar_lea.sflag [#allocation3], %s112
          %s114 = sand.u32 %s24, 1
          %s115 = smul.addr %s114, 8
          %s116 = scalar_lea.vmem [#allocation2], %s115
          %s118 = ssub.s32 128, 128
          %119 = vsyncadd %s113, %s118
          %s120 = smul.addr %s14, 128
          %s121 = scalar_lea.hbm %s0, %s120
          %s123 = sshll.u32 %s116, 4
          %s124 = int_to_ptr.vmem [resolvable:$true] %s123
          %126 = dma.hbm_to_vmem [thread:$0]  %s121, 128, %s124, %s113
        $region24: #{tpu_custom_call.1} parent=19 // pred_fallthru
          _
      $region20: #{tpu_custom_call.1} parent=5 // pred_fallthru
        _
      %p127 = scmp.le.s32.totalorder 1, %s14
      %p128 = scmp.lt.s32.totalorder %s14, 3
      %p129 = pnand %p127, %p128
      %p130 = pneg %p129
      // Predicated region
      $region25: #{tpu_custom_call.1} parent=5 // pred_check
        _
      $region26: #{tpu_custom_call.1} parent=5 // pred_check_branch
        %132 = sbr.rel (%p129) target = $region28
      $region27: #{tpu_custom_call.1} parent=5 // pred_region
        %s133 = ssub.s32 %s14, 1
        %s134 = sand.u32 %s27, 1
        %s135 = scalar_lea.sflag [#allocation3], %s134
        %s136 = sand.u32 %s27, 1
        %s137 = smul.addr %s136, 8
        %s138 = scalar_lea.vmem [#allocation2], %s137
        // Predicated region
        $region29: #{tpu_custom_call.1} parent=27 // pred_check
          %p139 = pneg %p40
        $region30: #{tpu_custom_call.1} parent=27 // pred_check_branch
          %141 = sbr.rel (%p139) target = $region32
        $region31: #{tpu_custom_call.1} parent=27 // pred_region
          %142 = dma.done %s135, 128
        $region32: #{tpu_custom_call.1} parent=27 // pred_fallthru
          _
        %s143 = sand.u32 %s27, 1
        %s144 = scalar_lea.sflag [#allocation3], %s143
        %s145 = sand.u32 %s27, 1
        %s146 = smul.addr %s145, 8
        %s147 = scalar_lea.vmem [#allocation2], %s146
        %p148 = pneg %p40
        %p149 = pneg %p37
        %p150 = pneg %p61
        %p151 = pneg %p58
        %p152 = pneg %p87
        %p153 = pneg %p84
        %s154 = sand.u32 %s74, 1
        %s155 = scalar_lea.sflag [#allocation4], %s154
        %s156 = sand.u32 %s74, 1
        %s157 = smul.addr %s156, 8
        %s158 = scalar_lea.vmem [#allocation5], %s157
        %v159 = vld [vmem:[%s138] sm:$0xff]
        %vm160 = vcmask 261120
        %v161 = vsel %vm160, %v159, 0.0
        %v162 = vrot.slane %v161, 4
        %v163 = vadd.f32 %v161, %v162
        %v164 = vrot.slane %v163, 2
        %v165 = vadd.f32 %v163, %v164
        %v166 = vrot.slane %v165, 1
        %v167 = vadd.f32 %v165, %v166
        %v168 = vmul.f32 %v159, %v167
        %v169 = vsel %vm160, %v168, 0.0
        %170 = vadd.xlane.f32.xlu0 %v169
        %v171 = vpop.xlane.xlu0 %170
        %v172 = vmul.f32 %v171, 0.00390625
        %v173 = vrot.slane %v172, 4
        %v174 = vadd.f32 %v172, %v173
        %v175 = vrot.slane %v174, 2
        %v176 = vadd.f32 %v174, %v175
        %v177 = vrot.slane %v176, 1
        %v178 = vadd.f32 %v176, %v177
        %v179 = vmul.f32 %v178, 0.015625
        %v180 = vmul.f32 %v172, %v179
        %v181 = vmul.f32 %v159, %v180
        %v182 = vld [vmem:[%s1] sm:$0xff]
        %184 = vset.pattern.permute.xlu0 0
        %185 = vperm.xlu0 %184, %v182
        %v186 = vpop.permute.xlu0 %185
        %v188 = vadd.f32 %v181, %v186
        %189 = vst.msk [vmem:[%s158] sm:$0xff] %vm160, %v188
        %s190 = sand.u32 %s74, 1
        %s191 = scalar_lea.sflag [#allocation4], %s190
        %s192 = sand.u32 %s74, 1
        %s193 = smul.addr %s192, 8
        %s194 = scalar_lea.vmem [#allocation5], %s193
        // Predicated region
        $region33: #{tpu_custom_call.1} parent=27 // pred_check
          %p195 = pneg %p84
        $region34: #{tpu_custom_call.1} parent=27 // pred_check_branch
          %197 = sbr.rel (%p195) target = $region36
        $region35: #{tpu_custom_call.1} parent=27 // pred_region
          %s199 = ssub.s32 128, 128
          %200 = vsyncadd %s191, %s199
          %s201 = smul.addr %s19, 128
          %s202 = scalar_lea.hbm %s2, %s201
          %s204 = sshll.u32 %s194, 4
          %s205 = int_to_ptr.vmem [resolvable:$true] %s204
          %207 = dma.vmem_to_hbm [thread:$0]  %s205, 128, %s202, %s191
        $region36: #{tpu_custom_call.1} parent=27 // pred_fallthru
          _
      $region28: #{tpu_custom_call.1} parent=5 // pred_fallthru
        _
      %p208 = scmp.le.s32.totalorder 2, %s14
      // Predicated region
      $region37: #{tpu_custom_call.1} parent=5 // pred_check
        %p209 = pneg %p208
      $region38: #{tpu_custom_call.1} parent=5 // pred_check_branch
        %211 = sbr.rel (%p209) target = $region40
      $region39: #{tpu_custom_call.1} parent=5 // pred_region
        %s212 = ssub.s32 %s14, 2
        // Predicated region
        $region41: #{tpu_custom_call.1} parent=39 // pred_check
          %p213 = pneg %p90
        $region42: #{tpu_custom_call.1} parent=39 // pred_check_branch
          %215 = sbr.rel (%p213) target = $region44
        $region43: #{tpu_custom_call.1} parent=39 // pred_region
          %s216 = sand.u32 %s75, 1
          %s217 = scalar_lea.sflag [#allocation4], %s216
          %s218 = sand.u32 %s75, 1
          %s219 = smul.addr %s218, 8
          %s220 = scalar_lea.vmem [#allocation5], %s219
          %221 = dma.done %s217, 128
        $region44: #{tpu_custom_call.1} parent=39 // pred_fallthru
          _
      $region40: #{tpu_custom_call.1} parent=5 // pred_fallthru
        _
    $region6: #{tpu_custom_call.1} parent=1 // loop_footer
      %s18 = sadd.s32 1, %s14
    $region7: #{tpu_custom_call.1} parent=1 // loop_footer_branch
      %13 = sbr.rel target = $region3
    $region8: #{tpu_custom_call.1} parent=1 // loop_exit
      _
    %222 = vsyncpa [#allocation3], 1
    %s223 = scalar_lea.sflag [#allocation3], 1
    %224 = vsyncpa %s223, 1
    %225 = vsyncpa [#allocation4], 1
    %s226 = scalar_lea.sflag [#allocation4], 1
    %227 = vsyncpa %s226, 1

</llo_original>
